<compile_context>
chip_gen: v7x
topology: tpu7x:2x2x1
jax: 0.10.0
libtpu: 0.0.40
codegen_flags: <defaults>
</compile_context>

<pallas_src>
import functools

import jax
import jax.numpy as jnp
from jax.experimental import pallas as pl
from jax.experimental.pallas import tpu as pltpu


def _item_encoder_kernel(img_ref, txt_ref, wimg_ref, bimg_ref, wtxt_ref,
                         btxt_ref, out_ref, *, d_embed, normalize, aggregation):
    # Pooling as plain sums (the 1/HW and 1/L mean scales are folded into the
    # fc weights in the wrapper).  Upcast to f32 in-register so bf16 inputs
    # can be streamed straight from HBM without a wrapper-side cast.
    img = img_ref[...].astype(jnp.float32)             # (TM, C, HW)
    txt = txt_ref[...].astype(jnp.float32)             # (TM, L, F)
    img_pooled = jnp.sum(img, axis=-1)                 # (TM, C)   global avg pool
    txt_pooled = jnp.sum(txt, axis=1)                  # (TM, F)   token mean pool

    img_emb = jnp.dot(img_pooled, wimg_ref[...],
                      preferred_element_type=jnp.float32) + bimg_ref[...]  # (TM, D)
    txt_emb = jnp.dot(txt_pooled, wtxt_ref[...],
                      preferred_element_type=jnp.float32) + btxt_ref[...]  # (TM, D)

    if normalize:
        # F.normalize(x, p=2, dim=-1) == x / max(||x||, eps).  rsqrt of the
        # eps^2-clamped squared norm is the same clamp (sqrt is monotone) and
        # runs on the EUP; the divide becomes a single VPU multiply.
        eps2 = 1e-24  # (1e-12)**2
        img_emb = img_emb * jax.lax.rsqrt(
            jnp.maximum(jnp.sum(img_emb * img_emb, axis=-1, keepdims=True), eps2))
        txt_emb = txt_emb * jax.lax.rsqrt(
            jnp.maximum(jnp.sum(txt_emb * txt_emb, axis=-1, keepdims=True), eps2))

    if aggregation == "concat":
        # Direct slice stores: no lane-axis concatenate (XLU shuffles).
        # For production D (multiple of 128) these are full-width unmasked vst.
        out_ref[:, :d_embed] = img_emb.astype(out_ref.dtype)
        out_ref[:, d_embed:] = txt_emb.astype(out_ref.dtype)
    elif aggregation == "sum":
        out_ref[...] = (img_emb + txt_emb).astype(out_ref.dtype)
    else:  # 'mean'
        out_ref[...] = (0.5 * (img_emb + txt_emb)).astype(out_ref.dtype)


def _round_up(x, m):
    return (x + m - 1) // m * m


def _pick_tile_and_vmem(M, bytes_per_row):
    """Largest row-tile that fits the double-buffered VMEM budget."""
    try:
        vmem_cap = pltpu.get_tpu_info().vmem_capacity_bytes
    except Exception:
        vmem_cap = 64 * 1024 * 1024  # conservative (v7x-sized) fallback
    vmem_limit = int(vmem_cap * 0.7)
    # Double-buffered activation streams; leave headroom for weights, the
    # (also double-buffered) output blocks and compiler scratch.
    stream_budget = int(vmem_limit * 0.6)
    tile = stream_budget // (2 * bytes_per_row)
    tile = max(8, min(int(tile), 2048, _round_up(M, 8)))
    tile = (tile // 8) * 8
    # Prefer an even number of grid steps so dimension_semantics=("parallel",)
    # load-balances across the 2 TensorCores of a v7x chip.
    if pl.cdiv(M, tile) % 2 == 1 and tile % 16 == 0:
        tile //= 2
    return tile, vmem_limit


def item_encoder_forward(images, texts, w_img, b_img, w_txt, b_txt,
                         *, enc_norm_out=True, aggregation_method="concat",
                         tile_m=None):
    """Pallas ItemEncoder forward.

    images: [B, S, C, H, W]   texts: [B, S, L, F]   (f32 or bf16)
    w_img: [C, D], b_img: [D], w_txt: [F, D], b_txt: [D]
    returns: [B, S, 2D] ('concat') or [B, S, D] ('sum' / 'mean'), float32.
    """
    B, S, C, H, W = images.shape
    _, _, L, F = texts.shape
    D = w_img.shape[1]
    M = B * S
    d_out = 2 * D if aggregation_method == "concat" else D

    # Stream activations in their native dtype (no wrapper-side upcast).
    img_flat = images.reshape(M, C, H * W)
    txt_flat = texts.reshape(M, L, F)

    # Fold the mean-pool scales into the fc weights; kernel uses plain sums.
    w_img_s = w_img.astype(jnp.float32) * (1.0 / float(H * W))
    w_txt_s = w_txt.astype(jnp.float32) * (1.0 / float(L))
    b_img2 = b_img.reshape(1, D).astype(jnp.float32)
    b_txt2 = b_txt.reshape(1, D).astype(jnp.float32)

    act_bytes = max(img_flat.dtype.itemsize, txt_flat.dtype.itemsize)
    bytes_per_row = act_bytes * (C * H * W + L * F) + 4 * d_out
    auto_tile, vmem_limit = _pick_tile_and_vmem(M, bytes_per_row)
    if tile_m is None:
        tile_m = auto_tile

    num_tiles = pl.cdiv(M, tile_m)
    M_pad = num_tiles * tile_m
    if M_pad != M:  # ragged last block: pad rows, slice them off afterwards
        img_flat = jnp.pad(img_flat, ((0, M_pad - M), (0, 0), (0, 0)))
        txt_flat = jnp.pad(txt_flat, ((0, M_pad - M), (0, 0), (0, 0)))

    kernel = functools.partial(_item_encoder_kernel, d_embed=D,
                               normalize=enc_norm_out,
                               aggregation=aggregation_method)

    out = pl.pallas_call(
        kernel,
        out_shape=jax.ShapeDtypeStruct((M_pad, d_out), jnp.float32),
        grid_spec=pltpu.PrefetchScalarGridSpec(
            num_scalar_prefetch=0,
            grid=(num_tiles,),
            in_specs=[
                # NOTE: add pipeline_mode=pl.Buffered(3) on the image stream
                # only if a profile shows its DMA exposed after tiling.
                pl.BlockSpec((tile_m, C, H * W), lambda i: (i, 0, 0)),  # images
                pl.BlockSpec((tile_m, L, F), lambda i: (i, 0, 0)),      # texts
                pl.BlockSpec((C, D), lambda i: (0, 0)),                 # w_img
                pl.BlockSpec((1, D), lambda i: (0, 0)),                 # b_img
                pl.BlockSpec((F, D), lambda i: (0, 0)),                 # w_txt
                pl.BlockSpec((1, D), lambda i: (0, 0)),                 # b_txt
            ],
            out_specs=pl.BlockSpec((tile_m, d_out), lambda i: (i, 0)),
        ),
        compiler_params=pltpu.CompilerParams(
            dimension_semantics=("parallel",),
            vmem_limit_bytes=vmem_limit),
    )(img_flat, txt_flat, w_img_s, b_img2, w_txt_s, b_txt2)

    return out[:M].reshape(B, S, d_out)


def _reference(images, texts, w_img, b_img, w_txt, b_txt,
               enc_norm_out=True, aggregation_method="concat"):
    B, S, C, H, W = images.shape
    images = images.astype(jnp.float32)
    texts = texts.astype(jnp.float32)
    img_pooled = jnp.mean(images.reshape(B, S, C, H * W), axis=-1)
    img_emb = img_pooled @ w_img + b_img
    txt_pooled = jnp.mean(texts, axis=2)
    txt_emb = txt_pooled @ w_txt + b_txt
    if enc_norm_out:
        img_emb = img_emb / jnp.maximum(
            jnp.linalg.norm(img_emb, axis=-1, keepdims=True), 1e-12)
        txt_emb = txt_emb / jnp.maximum(
            jnp.linalg.norm(txt_emb, axis=-1, keepdims=True), 1e-12)
    if aggregation_method == "concat":
        return jnp.concatenate([img_emb, txt_emb], axis=-1)
    if aggregation_method == "sum":
        return img_emb + txt_emb
    return 0.5 * (img_emb + txt_emb)


if __name__ == "__main__":
    # Small shapes consistent with the module's forward:
    B, S = 2, 8            # 2 outfits, 8 items each  -> M = 16 rows
    C, H, W = 4, 16, 16    # image feature maps (NCHW per item)
    L, F = 8, 64           # 8 tokens, token feature dim 64
    D = 32                 # enc_dim_per_modality

    key = jax.random.PRNGKey(0)
    k_img, k_txt, k_wi, k_bi, k_wt, k_bt = jax.random.split(key, 6)

    images = jax.random.normal(k_img, (B, S, C, H, W), dtype=jnp.float32)
    texts = jax.random.normal(k_txt, (B, S, L, F), dtype=jnp.float32)

    # Deterministic synthetic parameters (projection heads of each encoder).
    w_img = jax.random.normal(k_wi, (C, D), dtype=jnp.float32) * 0.05
    b_img = jax.random.normal(k_bi, (D,), dtype=jnp.float32) * 0.01
    w_txt = jax.random.normal(k_wt, (F, D), dtype=jnp.float32) * 0.05
    b_txt = jax.random.normal(k_bt, (D,), dtype=jnp.float32) * 0.01

    # --- f32 activations, concat aggregation ---
    out = item_encoder_forward(images, texts, w_img, b_img, w_txt, b_txt,
                               enc_norm_out=True, aggregation_method="concat")
    out = jax.block_until_ready(out)
    ref = _reference(images, texts, w_img, b_img, w_txt, b_txt,
                     enc_norm_out=True, aggregation_method="concat")
    assert out.shape == (B, S, 2 * D), out.shape
    assert jnp.allclose(out, ref, atol=1e-5, rtol=1e-5), "concat f32 mismatch"

    # --- bf16 activations streamed straight through (no wrapper upcast) ---
    images_bf = images.astype(jnp.bfloat16)
    texts_bf = texts.astype(jnp.bfloat16)
    out_bf = item_encoder_forward(images_bf, texts_bf, w_img, b_img, w_txt,
                                  b_txt, enc_norm_out=True,
                                  aggregation_method="concat")
    out_bf = jax.block_until_ready(out_bf)
    ref_bf = _reference(images_bf, texts_bf, w_img, b_img, w_txt, b_txt,
                        enc_norm_out=True, aggregation_method="concat")
    assert jnp.allclose(out_bf, ref_bf, atol=1e-4, rtol=1e-4), "concat bf16 mismatch"

    # --- 'sum' aggregation branch ---
    out_sum = item_encoder_forward(images, texts, w_img, b_img, w_txt, b_txt,
                                   enc_norm_out=True, aggregation_method="sum")
    out_sum = jax.block_until_ready(out_sum)
    ref_sum = _reference(images, texts, w_img, b_img, w_txt, b_txt,
                         enc_norm_out=True, aggregation_method="sum")
    assert out_sum.shape == (B, S, D), out_sum.shape
    assert jnp.allclose(out_sum, ref_sum, atol=1e-5, rtol=1e-5), "sum mismatch"

    print("KERNEL_OK")
</pallas_src>

<mosaic_0001>
module attributes {stable_mosaic.version = 11 : i64} {
  func.func @_item_encoder_kernel(%arg0: i32, %arg1: memref<8x4x256xf32, #tpu.memory_space<vmem>>, %arg2: memref<8x8x64xf32, #tpu.memory_space<vmem>>, %arg3: memref<4x32xf32, #tpu.memory_space<vmem>>, %arg4: memref<1x32xf32, #tpu.memory_space<vmem>>, %arg5: memref<64x32xf32, #tpu.memory_space<vmem>>, %arg6: memref<1x32xf32, #tpu.memory_space<vmem>>, %arg7: memref<8x64xf32, #tpu.memory_space<vmem>>) attributes {dimension_semantics = [#tpu.dimension_semantics<parallel>], iteration_bounds = array<i64: 2>, scalar_prefetch = 0 : i64, scratch_operands = 0 : i64, tpu.core_type = #tpu.core_type<tc>, window_params = [{transform_indices = @transform_0, window_bounds = array<i64: 8, 4, 256>}, {transform_indices = @transform_1, window_bounds = array<i64: 8, 8, 64>}, {pipeline_mode = #tpu.pipeline_mode<synchronous>, transform_indices = @transform_2, window_bounds = array<i64: 4, 32>}, {pipeline_mode = #tpu.pipeline_mode<synchronous>, transform_indices = @transform_3, window_bounds = array<i64: 1, 32>}, {pipeline_mode = #tpu.pipeline_mode<synchronous>, transform_indices = @transform_4, window_bounds = array<i64: 64, 32>}, {pipeline_mode = #tpu.pipeline_mode<synchronous>, transform_indices = @transform_5, window_bounds = array<i64: 1, 32>}, {transform_indices = @transform_6, window_bounds = array<i64: 8, 64>}]} {
    %c0 = arith.constant 0 : index
    %c0_0 = arith.constant 0 : index
    %c0_1 = arith.constant 0 : index
    %0 = vector.load %arg1[%c0, %c0_0, %c0_1] : memref<8x4x256xf32, #tpu.memory_space<vmem>>, vector<8x4x256xf32>
    %c0_2 = arith.constant 0 : index
    %c0_3 = arith.constant 0 : index
    %c0_4 = arith.constant 0 : index
    %1 = vector.load %arg2[%c0_2, %c0_3, %c0_4] : memref<8x8x64xf32, #tpu.memory_space<vmem>>, vector<8x8x64xf32>
    %cst = arith.constant dense<0.000000e+00> : vector<8x4xf32>
    %2 = vector.multi_reduction <add>, %0, %cst [2] : vector<8x4x256xf32> to vector<8x4xf32>
    %cst_5 = arith.constant dense<0.000000e+00> : vector<8x64xf32>
    %3 = vector.multi_reduction <add>, %1, %cst_5 [1] : vector<8x8x64xf32> to vector<8x64xf32>
    %c0_6 = arith.constant 0 : index
    %c0_7 = arith.constant 0 : index
    %4 = vector.load %arg3[%c0_6, %c0_7] : memref<4x32xf32, #tpu.memory_space<vmem>>, vector<4x32xf32>
    %cst_8 = arith.constant dense<0.000000e+00> : vector<8x32xf32>
    %5 = tpu.matmul %2, %4, %cst_8 {dimension_numbers = #tpu.dot_dimension_numbers<[1], [0], [0], [1], [0, 0, 1, 1], [], []>} : vector<8x4xf32>, vector<4x32xf32>, vector<8x32xf32> -> vector<8x32xf32>
    %c0_9 = arith.constant 0 : index
    %c0_10 = arith.constant 0 : index
    %6 = vector.load %arg4[%c0_9, %c0_10] : memref<1x32xf32, #tpu.memory_space<vmem>>, vector<1x32xf32>
    %7 = vector.broadcast %6 : vector<1x32xf32> to vector<8x32xf32>
    %8 = arith.addf %5, %7 : vector<8x32xf32>
    %c0_11 = arith.constant 0 : index
    %c0_12 = arith.constant 0 : index
    %9 = vector.load %arg5[%c0_11, %c0_12] : memref<64x32xf32, #tpu.memory_space<vmem>>, vector<64x32xf32>
    %cst_13 = arith.constant dense<0.000000e+00> : vector<8x32xf32>
    %10 = tpu.matmul %3, %9, %cst_13 {dimension_numbers = #tpu.dot_dimension_numbers<[1], [0], [0], [1], [0, 0, 1, 1], [], []>} : vector<8x64xf32>, vector<64x32xf32>, vector<8x32xf32> -> vector<8x32xf32>
    %c0_14 = arith.constant 0 : index
    %c0_15 = arith.constant 0 : index
    %11 = vector.load %arg6[%c0_14, %c0_15] : memref<1x32xf32, #tpu.memory_space<vmem>>, vector<1x32xf32>
    %12 = vector.broadcast %11 : vector<1x32xf32> to vector<8x32xf32>
    %13 = arith.addf %10, %12 : vector<8x32xf32>
    %14 = arith.mulf %8, %8 : vector<8x32xf32>
    %cst_16 = arith.constant dense<0.000000e+00> : vector<8xf32>
    %15 = vector.multi_reduction <add>, %14, %cst_16 [1] : vector<8x32xf32> to vector<8xf32>
    %16 = vector.shape_cast %15 : vector<8xf32> to vector<8x1xf32>
    %cst_17 = arith.constant 1.000000e-24 : f32
    %17 = vector.broadcast %cst_17 : f32 to vector<8x1xf32>
    %18 = arith.maximumf %16, %17 : vector<8x1xf32>
    %19 = math.rsqrt %18 : vector<8x1xf32>
    %20 = vector.broadcast %19 : vector<8x1xf32> to vector<8x32xf32>
    %21 = arith.mulf %8, %20 : vector<8x32xf32>
    %22 = arith.mulf %13, %13 : vector<8x32xf32>
    %cst_18 = arith.constant dense<0.000000e+00> : vector<8xf32>
    %23 = vector.multi_reduction <add>, %22, %cst_18 [1] : vector<8x32xf32> to vector<8xf32>
    %24 = vector.shape_cast %23 : vector<8xf32> to vector<8x1xf32>
    %cst_19 = arith.constant 1.000000e-24 : f32
    %25 = vector.broadcast %cst_19 : f32 to vector<8x1xf32>
    %26 = arith.maximumf %24, %25 : vector<8x1xf32>
    %27 = math.rsqrt %26 : vector<8x1xf32>
    %28 = vector.broadcast %27 : vector<8x1xf32> to vector<8x32xf32>
    %29 = arith.mulf %13, %28 : vector<8x32xf32>
    %c0_20 = arith.constant 0 : index
    %c0_21 = arith.constant 0 : index
    %30 = vector.load %arg7[%c0_20, %c0_21] : memref<8x64xf32, #tpu.memory_space<vmem>>, vector<8x32xf32>
    tpu.vector_store %arg7[%c0_20, %c0_21], %21 {strides = array<i32>} : memref<8x64xf32, #tpu.memory_space<vmem>>, vector<8x32xf32>,
    %c0_22 = arith.constant 0 : index
    %c32 = arith.constant 32 : index
    %31 = vector.load %arg7[%c0_22, %c32] : memref<8x64xf32, #tpu.memory_space<vmem>>, vector<8x32xf32>
    tpu.vector_store %arg7[%c0_22, %c32], %29 {strides = array<i32>} : memref<8x64xf32, #tpu.memory_space<vmem>>, vector<8x32xf32>,
    return
  }
  func.func @transform_0(%arg0: i32) -> (i32, i32, i32) {
    %c0_i32 = arith.constant 0 : i32
    %c0_i32_0 = arith.constant 0 : i32
    %c0_i32_1 = arith.constant 0 : i32
    return %arg0, %c0_i32, %c0_i32_0 : i32, i32, i32
  }
  func.func @transform_1(%arg0: i32) -> (i32, i32, i32) {
    %c0_i32 = arith.constant 0 : i32
    %c0_i32_0 = arith.constant 0 : i32
    %c0_i32_1 = arith.constant 0 : i32
    return %arg0, %c0_i32, %c0_i32_0 : i32, i32, i32
  }
  func.func @transform_2(%arg0: i32) -> (i32, i32) {
    %c0_i32 = arith.constant 0 : i32
    %c0_i32_0 = arith.constant 0 : i32
    %c0_i32_1 = arith.constant 0 : i32
    return %c0_i32, %c0_i32_0 : i32, i32
  }
  func.func @transform_3(%arg0: i32) -> (i32, i32) {
    %c0_i32 = arith.constant 0 : i32
    %c0_i32_0 = arith.constant 0 : i32
    %c0_i32_1 = arith.constant 0 : i32
    return %c0_i32, %c0_i32_0 : i32, i32
  }
  func.func @transform_4(%arg0: i32) -> (i32, i32) {
    %c0_i32 = arith.constant 0 : i32
    %c0_i32_0 = arith.constant 0 : i32
    %c0_i32_1 = arith.constant 0 : i32
    return %c0_i32, %c0_i32_0 : i32, i32
  }
  func.func @transform_5(%arg0: i32) -> (i32, i32) {
    %c0_i32 = arith.constant 0 : i32
    %c0_i32_0 = arith.constant 0 : i32
    %c0_i32_1 = arith.constant 0 : i32
    return %c0_i32, %c0_i32_0 : i32, i32
  }
  func.func @transform_6(%arg0: i32) -> (i32, i32) {
    %c0_i32 = arith.constant 0 : i32
    %c0_i32_0 = arith.constant 0 : i32
    return %arg0, %c0_i32 : i32, i32
  }
}

</mosaic_0001>

<llo_original>
// kernel: tpu_custom_call.1
$region0: #{tpu_custom_call.1}
  #allocation0 [shape = 'u32[]', space=smem, size = 0x4, offset = 0x4, fixed_abs, tag = 'smem constant byte address 0x4 - core index']
  #allocation1 [shape = 'u32[144,128]{1,0:T(1,128)}', space=vmem, size = 0x12000, scoped, tag = 'internal scratch']
  %s0 = inlined_call_operand.hbm [shape: f32[16,4,256], index: 0, kind: input, shape index: {}]
  %s1 = inlined_call_operand.hbm [shape: f32[16,8,64], index: 1, kind: input, shape index: {}]
  %s2 = inlined_call_operand.vmem [shape: f32[4,32], index: 2, kind: input, shape index: {}]
  %s3 = inlined_call_operand.vmem [shape: f32[1,32], index: 3, kind: input, shape index: {}]
  %s4 = inlined_call_operand.vmem [shape: f32[64,32], index: 4, kind: input, shape index: {}]
  %s5 = inlined_call_operand.vmem [shape: f32[1,32], index: 5, kind: input, shape index: {}]
  %s6 = inlined_call_operand.hbm [shape: f32[16,64], index: 6, kind: output, shape index: {}]
  %s7 = sld [smem:[#allocation0]]
  $region65: #{tpu_custom_call.1} parent=0
    _
  %s9 = ssub.s32 1, %s7
  %s10 = scalar_select 0, %s9, %s7
  $region1: #{tpu_custom_call.1} parent=0
    #allocation2 [shape = 'u8[65536]{0}', space=vmem, size = 0x10000, scoped, tag = 'input window, operand 0']
    #allocation3 [shape = 's32[2]{0}', space=sflag, size = 0x8, scoped, tag = 'scoped memory for tpu_custom_call.1']
    #allocation4 [shape = 's32[2]{0}', space=sflag, size = 0x8, scoped, tag = 'scoped memory for tpu_custom_call.1']
    #allocation5 [shape = 'u8[65536]{0}', space=vmem, size = 0x10000, scoped, tag = 'input window, operand 1']
    #allocation6 [shape = 's32[2]{0}', space=sflag, size = 0x8, scoped, tag = 'scoped memory for tpu_custom_call.1']
    #allocation7 [shape = 'u8[8192]{0}', space=vmem, size = 0x2000, scoped, tag = 'output window, operand 0']
    %11 = vsyncpa [#allocation3], 0
    %s12 = scalar_lea.sflag [#allocation3], 1
    %13 = vsyncpa %s12, 0
    %14 = vsyncpa [#allocation6], 0
    %s15 = scalar_lea.sflag [#allocation6], 1
    %16 = vsyncpa %s15, 0
    %17 = vsyncpa [#allocation4], 0
    %s18 = scalar_lea.sflag [#allocation4], 1
    %19 = vsyncpa %s18, 0
    loop: start=0, step=1, limit=4
    $region2: #{tpu_custom_call.1} parent=1 // loop_pre_header
      _
    $region3: #{tpu_custom_call.1} parent=1 // loop_header
      %s21 = sphi 0, %s25
      %p22 = scmp.ge.s32.totalorder %s21, 4
      %s31 = sphi 0, %s33
      %s34 = sphi 0, %s31
      %s35 = sphi 0, %s34
      %s51 = sphi 0, %s35
      %s57 = sphi 0, %s59
      %s60 = sphi 0, %s57
      %s61 = sphi 0, %s60
      %s77 = sphi 0, %s61
      %s81 = sphi 0, %s81
      %s83 = sphi 0, %s81
      %s84 = sphi 0, %s83
      %s98 = sphi 0, %s84
      %s102 = sphi 0, %s102
      %s104 = sphi 0, %s102
      %s105 = sphi 0, %s104
      %s119 = sphi 0, %s105
      %s123 = sphi 0, %s123
      %s125 = sphi 0, %s123
      %s126 = sphi 0, %s125
      %s140 = sphi 0, %s126
      %s144 = sphi 0, %s144
      %s146 = sphi 0, %s144
      %s147 = sphi 0, %s146
      %s161 = sphi 0, %s147
      %s167 = sphi 0, %s169
      %s170 = sphi 0, %s167
      %s171 = sphi 0, %s170
      %s187 = sphi 0, %s171
    $region4: #{tpu_custom_call.1} parent=1 // loop_header_branch
      %24 = sbr.rel (%p22) target = $region8
    $region5: #{tpu_custom_call.1} parent=1 // loop_body
      %s26 = ssub.s32 %s21, 1
      %s27 = ssub.s32 %s21, 2
      %s28 = sadd.s32 %s21, 1
      %s29 = ssub.s32 %s21, %s28
      %p30 = scmp.eq.s32.totalorder %s29, 0
      %s32 = sadd.s32 %s31, 1
      %s33 = scalar_select %p30, %s31, %s32
      %p36 = pneg %p30
      %p37 = scmp.eq.s32.totalorder %s21, 1
      %p38 = por %p36, %p37
      %p39 = scmp.ne.s32.totalorder %s31, %s34
      %p40 = scmp.eq.s32.totalorder %s21, 0
      %p41 = por %p39, %p40
      %p42 = scmp.ne.s32.totalorder %s31, %s34
      %p43 = scmp.eq.s32.totalorder %s26, 1
      %p44 = por %p42, %p43
      %p45 = scmp.ne.s32.totalorder %s34, %s35
      %p46 = scmp.eq.s32.totalorder %s26, 0
      %p47 = por %p45, %p46
      %p48 = scmp.ne.s32.totalorder %s34, %s35
      %p49 = scmp.eq.s32.totalorder %s27, 1
      %p50 = por %p48, %p49
      %p52 = scmp.ne.s32.totalorder %s35, %s51
      %p53 = scmp.eq.s32.totalorder %s27, 0
      %p54 = por %p52, %p53
      %s55 = ssub.s32 %s21, %s28
      %p56 = scmp.eq.s32.totalorder %s55, 0
      %s58 = sadd.s32 %s57, 1
      %s59 = scalar_select %p56, %s57, %s58
      %p62 = pneg %p56
      %p63 = scmp.eq.s32.totalorder %s21, 1
      %p64 = por %p62, %p63
      %p65 = scmp.ne.s32.totalorder %s57, %s60
      %p66 = scmp.eq.s32.totalorder %s21, 0
      %p67 = por %p65, %p66
      %p68 = scmp.ne.s32.totalorder %s57, %s60
      %p69 = scmp.eq.s32.totalorder %s26, 1
      %p70 = por %p68, %p69
      %p71 = scmp.ne.s32.totalorder %s60, %s61
      %p72 = scmp.eq.s32.totalorder %s26, 0
      %p73 = por %p71, %p72
      %p74 = scmp.ne.s32.totalorder %s60, %s61
      %p75 = scmp.eq.s32.totalorder %s27, 1
      %p76 = por %p74, %p75
      %p78 = scmp.ne.s32.totalorder %s61, %s77
      %p79 = scmp.eq.s32.totalorder %s27, 0
      %p80 = por %p78, %p79
      %s82 = sadd.s32 %s81, 1
      %p85 = scmp.eq.s32.totalorder %s21, 1
      %p86 = scmp.ne.s32.totalorder %s81, %s83
      %p87 = scmp.eq.s32.totalorder %s21, 0
      %p88 = por %p86, %p87
      %p89 = scmp.ne.s32.totalorder %s81, %s83
      %p90 = scmp.eq.s32.totalorder %s26, 1
      %p91 = por %p89, %p90
      %p92 = scmp.ne.s32.totalorder %s83, %s84
      %p93 = scmp.eq.s32.totalorder %s26, 0
      %p94 = por %p92, %p93
      %p95 = scmp.ne.s32.totalorder %s83, %s84
      %p96 = scmp.eq.s32.totalorder %s27, 1
      %p97 = por %p95, %p96
      %p99 = scmp.ne.s32.totalorder %s84, %s98
      %p100 = scmp.eq.s32.totalorder %s27, 0
      %p101 = por %p99, %p100
      %s103 = sadd.s32 %s102, 1
      %p106 = scmp.eq.s32.totalorder %s21, 1
      %p107 = scmp.ne.s32.totalorder %s102, %s104
      %p108 = scmp.eq.s32.totalorder %s21, 0
      %p109 = por %p107, %p108
      %p110 = scmp.ne.s32.totalorder %s102, %s104
      %p111 = scmp.eq.s32.totalorder %s26, 1
      %p112 = por %p110, %p111
      %p113 = scmp.ne.s32.totalorder %s104, %s105
      %p114 = scmp.eq.s32.totalorder %s26, 0
      %p115 = por %p113, %p114
      %p116 = scmp.ne.s32.totalorder %s104, %s105
      %p117 = scmp.eq.s32.totalorder %s27, 1
      %p118 = por %p116, %p117
      %p120 = scmp.ne.s32.totalorder %s105, %s119
      %p121 = scmp.eq.s32.totalorder %s27, 0
      %p122 = por %p120, %p121
      %s124 = sadd.s32 %s123, 1
      %p127 = scmp.eq.s32.totalorder %s21, 1
      %p128 = scmp.ne.s32.totalorder %s123, %s125
      %p129 = scmp.eq.s32.totalorder %s21, 0
      %p130 = por %p128, %p129
      %p131 = scmp.ne.s32.totalorder %s123, %s125
      %p132 = scmp.eq.s32.totalorder %s26, 1
      %p133 = por %p131, %p132
      %p134 = scmp.ne.s32.totalorder %s125, %s126
      %p135 = scmp.eq.s32.totalorder %s26, 0
      %p136 = por %p134, %p135
      %p137 = scmp.ne.s32.totalorder %s125, %s126
      %p138 = scmp.eq.s32.totalorder %s27, 1
      %p139 = por %p137, %p138
      %p141 = scmp.ne.s32.totalorder %s126, %s140
      %p142 = scmp.eq.s32.totalorder %s27, 0
      %p143 = por %p141, %p142
      %s145 = sadd.s32 %s144, 1
      %p148 = scmp.eq.s32.totalorder %s21, 1
      %p149 = scmp.ne.s32.totalorder %s144, %s146
      %p150 = scmp.eq.s32.totalorder %s21, 0
      %p151 = por %p149, %p150
      %p152 = scmp.ne.s32.totalorder %s144, %s146
      %p153 = scmp.eq.s32.totalorder %s26, 1
      %p154 = por %p152, %p153
      %p155 = scmp.ne.s32.totalorder %s146, %s147
      %p156 = scmp.eq.s32.totalorder %s26, 0
      %p157 = por %p155, %p156
      %p158 = scmp.ne.s32.totalorder %s146, %s147
      %p159 = scmp.eq.s32.totalorder %s27, 1
      %p160 = por %p158, %p159
      %p162 = scmp.ne.s32.totalorder %s147, %s161
      %p163 = scmp.eq.s32.totalorder %s27, 0
      %p164 = por %p162, %p163
      %s165 = ssub.s32 %s21, %s28
      %p166 = scmp.eq.s32.totalorder %s165, 0
      %s168 = sadd.s32 %s167, 1
      %s169 = scalar_select %p166, %s167, %s168
      %p172 = pneg %p166
      %p173 = scmp.eq.s32.totalorder %s21, 1
      %p174 = por %p172, %p173
      %p175 = scmp.ne.s32.totalorder %s167, %s170
      %p176 = scmp.eq.s32.totalorder %s21, 0
      %p177 = por %p175, %p176
      %p178 = scmp.ne.s32.totalorder %s167, %s170
      %p179 = scmp.eq.s32.totalorder %s26, 1
      %p180 = por %p178, %p179
      %p181 = scmp.ne.s32.totalorder %s170, %s171
      %p182 = scmp.eq.s32.totalorder %s26, 0
      %p183 = por %p181, %p182
      %p184 = scmp.ne.s32.totalorder %s170, %s171
      %p185 = scmp.eq.s32.totalorder %s27, 1
      %p186 = por %p184, %p185
      %p188 = scmp.ne.s32.totalorder %s171, %s187
      %p189 = scmp.eq.s32.totalorder %s27, 0
      %p190 = por %p188, %p189
      %p191 = scmp.le.s32.totalorder 1, %s21
      %p192 = scmp.lt.s32.totalorder %s21, 3
      %p193 = pnand %p191, %p192
      %p194 = pneg %p193
      // Predicated region
      $region9: #{tpu_custom_call.1} parent=5 // pred_check
        _
      $region10: #{tpu_custom_call.1} parent=5 // pred_check_branch
        %196 = sbr.rel (%p193) target = $region12
      $region11: #{tpu_custom_call.1} parent=5 // pred_region
        %s197 = ssub.s32 %s21, 1
        // Predicated region
        $region13: #{tpu_custom_call.1} parent=11 // pred_check
          %p198 = pneg %p94
        $region14: #{tpu_custom_call.1} parent=11 // pred_check_branch
          %200 = sbr.rel (%p198) target = $region16
        $region15: #{tpu_custom_call.1} parent=11 // pred_region
          _
        $region16: #{tpu_custom_call.1} parent=11 // pred_fallthru
          _
        // Predicated region
        $region17: #{tpu_custom_call.1} parent=11 // pred_check
          %p201 = pneg %p115
        $region18: #{tpu_custom_call.1} parent=11 // pred_check_branch
          %203 = sbr.rel (%p201) target = $region20
        $region19: #{tpu_custom_call.1} parent=11 // pred_region
          _
        $region20: #{tpu_custom_call.1} parent=11 // pred_fallthru
          _
        // Predicated region
        $region21: #{tpu_custom_call.1} parent=11 // pred_check
          %p204 = pneg %p136
        $region22: #{tpu_custom_call.1} parent=11 // pred_check_branch
          %206 = sbr.rel (%p204) target = $region24
        $region23: #{tpu_custom_call.1} parent=11 // pred_region
          _
        $region24: #{tpu_custom_call.1} parent=11 // pred_fallthru
          _
        // Predicated region
        $region25: #{tpu_custom_call.1} parent=11 // pred_check
          %p207 = pneg %p157
        $region26: #{tpu_custom_call.1} parent=11 // pred_check_branch
          %209 = sbr.rel (%p207) target = $region28
        $region27: #{tpu_custom_call.1} parent=11 // pred_region
          _
        $region28: #{tpu_custom_call.1} parent=11 // pred_fallthru
          _
      $region12: #{tpu_custom_call.1} parent=5 // pred_fallthru
        _
      %p210 = scmp.lt.s32.totalorder %s21, 2
      // Predicated region
      $region29: #{tpu_custom_call.1} parent=5 // pred_check
        %p211 = pneg %p210
      $region30: #{tpu_custom_call.1} parent=5 // pred_check_branch
        %213 = sbr.rel (%p211) target = $region32
      $region31: #{tpu_custom_call.1} parent=5 // pred_region
        // Predicated region
        $region33: #{tpu_custom_call.1} parent=31 // pred_check
          %p214 = pneg %p41
        $region34: #{tpu_custom_call.1} parent=31 // pred_check_branch
          %216 = sbr.rel (%p214) target = $region36
        $region35: #{tpu_custom_call.1} parent=31 // pred_region
          %s217 = sand.u32 %s31, 1
          %s218 = scalar_lea.sflag [#allocation3], %s217
          %s219 = sand.u32 %s31, 1
          %s220 = smul.addr %s219, 64
          %s221 = scalar_lea.vmem [#allocation2], %s220
          %s222 = smul.u32 8, %s21
          %s224 = ssub.s32 1024, 1024
          %225 = vsyncadd %s218, %s224
          %s226 = smul.addr %s222, 2
          %s227 = smul.addr %s226, 64
          %s228 = scalar_lea.hbm %s0, %s227
          %s229 = sshll.u32 %s221, 4
          %s230 = int_to_ptr.vmem [resolvable:$true] %s229
          %235 = dma.hbm_to_vmem [thread:$0]  %s228, 1024, %s230, %s218, 128, 128, 8
        $region36: #{tpu_custom_call.1} parent=31 // pred_fallthru
          _
        // Predicated region
        $region37: #{tpu_custom_call.1} parent=31 // pred_check
          %p236 = pneg %p67
        $region38: #{tpu_custom_call.1} parent=31 // pred_check_branch
          %238 = sbr.rel (%p236) target = $region40
        $region39: #{tpu_custom_call.1} parent=31 // pred_region
          %s239 = sand.u32 %s57, 1
          %s240 = scalar_lea.sflag [#allocation6], %s239
          %s241 = sand.u32 %s57, 1
          %s242 = smul.addr %s241, 64
          %s243 = scalar_lea.vmem [#allocation5], %s242
          %s244 = smul.u32 8, %s21
          %s246 = ssub.s32 1024, 1024
          %247 = vsyncadd %s240, %s246
          %s248 = smul.addr %s244, 128
          %s249 = scalar_lea.hbm %s1, %s248
          %s250 = sshll.u32 %s243, 4
          %s251 = int_to_ptr.vmem [resolvable:$true] %s250
          %256 = dma.hbm_to_vmem [thread:$0]  %s249, 1024, %s251, %s240, 128, 128, 8
        $region40: #{tpu_custom_call.1} parent=31 // pred_fallthru
          _
      $region32: #{tpu_custom_call.1} parent=5 // pred_fallthru
        _
      %p257 = scmp.le.s32.totalorder 1, %s21
      %p258 = scmp.lt.s32.totalorder %s21, 3
      %p259 = pnand %p257, %p258
      %p260 = pneg %p259
      // Predicated region
      $region41: #{tpu_custom_call.1} parent=5 // pred_check
        _
      $region42: #{tpu_custom_call.1} parent=5 // pred_check_branch
        %262 = sbr.rel (%p259) target = $region44
      $region43: #{tpu_custom_call.1} parent=5 // pred_region
        %s263 = ssub.s32 %s21, 1
        %s264 = sand.u32 %s34, 1
        %s265 = scalar_lea.sflag [#allocation3], %s264
        %s266 = sand.u32 %s34, 1
        %s267 = smul.addr %s266, 64
        %s268 = scalar_lea.vmem [#allocation2], %s267
        // Predicated region
        $region45: #{tpu_custom_call.1} parent=43 // pred_check
          %p269 = pneg %p47
        $region46: #{tpu_custom_call.1} parent=43 // pred_check_branch
          %271 = sbr.rel (%p269) target = $region48
        $region47: #{tpu_custom_call.1} parent=43 // pred_region
          %272 = dma.done %s265, 1024
        $region48: #{tpu_custom_call.1} parent=43 // pred_fallthru
          _
        %s273 = sand.u32 %s60, 1
        %s274 = scalar_lea.sflag [#allocation6], %s273
        %s275 = sand.u32 %s60, 1
        %s276 = smul.addr %s275, 64
        %s277 = scalar_lea.vmem [#allocation5], %s276
        // Predicated region
        $region49: #{tpu_custom_call.1} parent=43 // pred_check
          %p278 = pneg %p73
        $region50: #{tpu_custom_call.1} parent=43 // pred_check_branch
          %280 = sbr.rel (%p278) target = $region52
        $region51: #{tpu_custom_call.1} parent=43 // pred_region
          %281 = dma.done %s274, 1024
        $region52: #{tpu_custom_call.1} parent=43 // pred_fallthru
          _
        %s282 = sand.u32 %s34, 1
        %s283 = scalar_lea.sflag [#allocation3], %s282
        %s284 = sand.u32 %s34, 1
        %s285 = smul.addr %s284, 64
        %s286 = scalar_lea.vmem [#allocation2], %s285
        %p287 = pneg %p47
        %p288 = pneg %p44
        %s289 = sand.u32 %s60, 1
        %s290 = scalar_lea.sflag [#allocation6], %s289
        %s291 = sand.u32 %s60, 1
        %s292 = smul.addr %s291, 64
        %s293 = scalar_lea.vmem [#allocation5], %s292
        %p294 = pneg %p73
        %p295 = pneg %p70
        %p296 = pneg %p94
        %p297 = pneg %p91
        %p298 = pneg %p115
        %p299 = pneg %p112
        %p300 = pneg %p136
        %p301 = pneg %p133
        %p302 = pneg %p157
        %p303 = pneg %p154
        %p304 = pneg %p183
        %p305 = pneg %p180
        %s306 = sand.u32 %s170, 1
        %s307 = scalar_lea.sflag [#allocation4], %s306
        %s308 = sand.u32 %s170, 1
        %s309 = smul.addr %s308, 8
        %s310 = scalar_lea.vmem [#allocation7], %s309
        %s311 = smul.u32 8, %s26
        %s312 = smul.u32 8, %s26
        %v313 = vld [vmem:[%s268] sm:$0xff]
        %v314 = vld [vmem:[%s268 + $0x8] sm:$0xff]
        %v315 = vld [vmem:[%s268 + $0x10] sm:$0xff]
        %v316 = vld [vmem:[%s268 + $0x18] sm:$0xff]
        %v317 = vld [vmem:[%s268 + $0x20] sm:$0xff]
        %v318 = vld [vmem:[%s268 + $0x28] sm:$0xff]
        %v319 = vld [vmem:[%s268 + $0x30] sm:$0xff]
        %v320 = vld [vmem:[%s268 + $0x38] sm:$0xff]
        %v321 = vld [vmem:[%s277] sm:$0xff]
        %v322 = vld [vmem:[%s277 + $0x8] sm:$0xff]
        %v323 = vld [vmem:[%s277 + $0x10] sm:$0xff]
        %v324 = vld [vmem:[%s277 + $0x18] sm:$0xff]
        %v325 = vld [vmem:[%s277 + $0x20] sm:$0xff]
        %v326 = vld [vmem:[%s277 + $0x28] sm:$0xff]
        %v327 = vld [vmem:[%s277 + $0x30] sm:$0xff]
        %v328 = vld [vmem:[%s277 + $0x38] sm:$0xff]
        %v337 = vcombine.high %v313, %v313
        %v338 = vcombine.high %v314, %v314
        %v339 = vcombine.high %v315, %v315
        %v340 = vcombine.high %v316, %v316
        %v341 = vcombine.high %v317, %v317
        %v342 = vcombine.high %v318, %v318
        %v343 = vcombine.high %v319, %v319
        %v344 = vcombine.high %v320, %v320
        %vm353 = vcmask 1043456
        %v354 = vsel %vm353, %v313, 0.0
        %v355 = vsel %vm353, %v337, 0.0
        %v356 = vadd.f32 %v354, %v355
        %357 = vadd.xlane.f32.xlu0 %v356
        %v358 = vpop.xlane.xlu0 %357
        %v359 = vsel %vm353, %v314, 0.0
        %v360 = vsel %vm353, %v338, 0.0
        %v361 = vadd.f32 %v359, %v360
        %362 = vadd.xlane.f32.xlu0 %v361
        %v363 = vpop.xlane.xlu0 %362
        %v364 = vsel %vm353, %v315, 0.0
        %v365 = vsel %vm353, %v339, 0.0
        %v366 = vadd.f32 %v364, %v365
        %367 = vadd.xlane.f32.xlu0 %v366
        %v368 = vpop.xlane.xlu0 %367
        %v369 = vsel %vm353, %v316, 0.0
        %v370 = vsel %vm353, %v340, 0.0
        %v371 = vadd.f32 %v369, %v370
        %372 = vadd.xlane.f32.xlu0 %v371
        %v373 = vpop.xlane.xlu0 %372
        %v374 = vsel %vm353, %v317, 0.0
        %v375 = vsel %vm353, %v341, 0.0
        %v376 = vadd.f32 %v374, %v375
        %377 = vadd.xlane.f32.xlu0 %v376
        %v378 = vpop.xlane.xlu0 %377
        %v379 = vsel %vm353, %v318, 0.0
        %v380 = vsel %vm353, %v342, 0.0
        %v381 = vadd.f32 %v379, %v380
        %382 = vadd.xlane.f32.xlu0 %v381
        %v383 = vpop.xlane.xlu0 %382
        %v384 = vsel %vm353, %v319, 0.0
        %v385 = vsel %vm353, %v343, 0.0
        %v386 = vadd.f32 %v384, %v385
        %387 = vadd.xlane.f32.xlu0 %v386
        %v388 = vpop.xlane.xlu0 %387
        %v389 = vsel %vm353, %v320, 0.0
        %v390 = vsel %vm353, %v344, 0.0
        %v391 = vadd.f32 %v389, %v390
        %392 = vadd.xlane.f32.xlu0 %v391
        %v393 = vpop.xlane.xlu0 %392
        %vm394 = vcmask 523264
        %v395 = vsel %vm394, %v321, 0.0
        %v396 = vrot.slane %v395, 4
        %v397 = vadd.f32 %v395, %v396
        %v398 = vrot.slane %v397, 2
        %v399 = vadd.f32 %v397, %v398
        %v400 = vrot.slane %v399, 1
        %v401 = vadd.f32 %v399, %v400
        %v402 = vsel %vm394, %v322, 0.0
        %v403 = vrot.slane %v402, 4
        %v404 = vadd.f32 %v402, %v403
        %v405 = vrot.slane %v404, 2
        %v406 = vadd.f32 %v404, %v405
        %v407 = vrot.slane %v406, 1
        %v408 = vadd.f32 %v406, %v407
        %v409 = vsel %vm394, %v323, 0.0
        %v410 = vrot.slane %v409, 4
        %v411 = vadd.f32 %v409, %v410
        %v412 = vrot.slane %v411, 2
        %v413 = vadd.f32 %v411, %v412
        %v414 = vrot.slane %v413, 1
        %v415 = vadd.f32 %v413, %v414
        %v416 = vsel %vm394, %v324, 0.0
        %v417 = vrot.slane %v416, 4
        %v418 = vadd.f32 %v416, %v417
        %v419 = vrot.slane %v418, 2
        %v420 = vadd.f32 %v418, %v419
        %v421 = vrot.slane %v420, 1
        %v422 = vadd.f32 %v420, %v421
        %v423 = vsel %vm394, %v325, 0.0
        %v424 = vrot.slane %v423, 4
        %v425 = vadd.f32 %v423, %v424
        %v426 = vrot.slane %v425, 2
        %v427 = vadd.f32 %v425, %v426
        %v428 = vrot.slane %v427, 1
        %v429 = vadd.f32 %v427, %v428
        %v430 = vsel %vm394, %v326, 0.0
        %v431 = vrot.slane %v430, 4
        %v432 = vadd.f32 %v430, %v431
        %v433 = vrot.slane %v432, 2
        %v434 = vadd.f32 %v432, %v433
        %v435 = vrot.slane %v434, 1
        %v436 = vadd.f32 %v434, %v435
        %v437 = vsel %vm394, %v327, 0.0
        %v438 = vrot.slane %v437, 4
        %v439 = vadd.f32 %v437, %v438
        %v440 = vrot.slane %v439, 2
        %v441 = vadd.f32 %v439, %v440
        %v442 = vrot.slane %v441, 1
        %v443 = vadd.f32 %v441, %v442
        %v444 = vsel %vm394, %v328, 0.0
        %v445 = vrot.slane %v444, 4
        %v446 = vadd.f32 %v444, %v445
        %v447 = vrot.slane %v446, 2
        %v448 = vadd.f32 %v446, %v447
        %v449 = vrot.slane %v448, 1
        %v450 = vadd.f32 %v448, %v449
        %v451 = vld [vmem:[%s2] sm:$0xf]
        %v452 = vld [vmem:[%s3] sm:$0x1]
        %v454 = vlaneseq
        %v455 = vshrl.u32 %v454, 7
        %v456 = vsub.s32 0, %v455
        %v457 = vrot.slane %v452, %v456
        %v467 = vlaneseq
        %v468 = vand.u32 %v467, 127
        %v469 = vlaneseq
        %v470 = vshrl.u32 %v469, 7
        %v471 = vsub.s32 %v468, %v470
        %v472 = vrot.slane %v358, %v471
        %v473 = vlaneseq
        %v474 = vshrl.u32 %v473, 7
        %v475 = vsub.s32 %v468, %v474
        %v476 = vrot.slane %v363, %v475
        %v477 = vlaneseq
        %v478 = vshrl.u32 %v477, 7
        %v479 = vsub.s32 %v468, %v478
        %v480 = vrot.slane %v368, %v479
        %v481 = vlaneseq
        %v482 = vshrl.u32 %v481, 7
        %v483 = vsub.s32 %v468, %v482
        %v484 = vrot.slane %v373, %v483
        %v485 = vlaneseq
        %v486 = vshrl.u32 %v485, 7
        %v487 = vsub.s32 %v468, %v486
        %v488 = vrot.slane %v378, %v487
        %v489 = vlaneseq
        %v490 = vshrl.u32 %v489, 7
        %v491 = vsub.s32 %v468, %v490
        %v492 = vrot.slane %v383, %v491
        %v493 = vlaneseq
        %v494 = vshrl.u32 %v493, 7
        %v495 = vsub.s32 %v468, %v494
        %v496 = vrot.slane %v388, %v495
        %v497 = vlaneseq
        %v498 = vshrl.u32 %v497, 7
        %v499 = vsub.s32 %v468, %v498
        %v500 = vrot.slane %v393, %v499
        %vm501 = vcmask 1041409
        %v502 = vsel %vm501, %v476, %v472
        %vm503 = vcmask 1042434
        %v504 = vsel %vm503, %v480, %v502
        %vm505 = vcmask 1043459
        %v506 = vsel %vm505, %v484, %v504
        %vm507 = vcmask 1044484
        %v508 = vsel %vm507, %v488, %v506
        %vm509 = vcmask 1045509
        %v510 = vsel %vm509, %v492, %v508
        %vm511 = vcmask 1046534
        %v512 = vsel %vm511, %v496, %v510
        %vm513 = vcmask 1047559
        %v514 = vsel %vm513, %v500, %v512
        %vm515 = vcmask 31744
        %v516 = vsel %vm515, %v514, 0
        %v519 = vsel %vm353, %v451, 0
        %521 = vmatprep.subr.mxu0 0.0
        %522 = vmatpush1.msra.mxu0 %v519
        %523 = vmatprep.subr.mxu0 0.0
        %524 = vmatpush1.msra.mxu0 0.0
        %525 = vmatprep.subr.mxu0 0.0
        %526 = vmatpush1.msra.mxu0 0.0
        %527 = vmatprep.subr.mxu0 0.0
        %528 = vmatpush1.msra.mxu0 0.0
        %529 = vmatprep.subr.mxu0 0.0
        %530 = vmatpush1.msra.mxu0 0.0
        %531 = vmatprep.subr.mxu0 0.0
        %532 = vmatpush1.msra.mxu0 0.0
        %533 = vmatprep.subr.mxu0 0.0
        %534 = vmatpush1.msra.mxu0 0.0
        %535 = vmatprep.subr.mxu0 0.0
        %536 = vmatpush1.msra.mxu0 0.0
        %537 = vmatprep.subr.mxu0 0.0
        %538 = vmatpush1.msra.mxu0 0.0
        %539 = vmatprep.subr.mxu0 0.0
        %540 = vmatpush1.msra.mxu0 0.0
        %541 = vmatprep.subr.mxu0 0.0
        %542 = vmatpush1.msra.mxu0 0.0
        %543 = vmatprep.subr.mxu0 0.0
        %544 = vmatpush1.msra.mxu0 0.0
        %545 = vmatprep.subr.mxu0 0.0
        %546 = vmatpush1.msra.mxu0 0.0
        %547 = vmatprep.subr.mxu0 0.0
        %548 = vmatpush1.msra.mxu0 0.0
        %549 = vmatprep.subr.mxu0 0.0
        %550 = vmatpush1.msra.mxu0 0.0
        %551 = vmatprep.subr.mxu0 0.0
        %552 = vmatpush1.msra.mxu0 0.0
        %553 = vmatprep.subr.mxu0 0.0
        %554 = vmatpush1.msra.mxu0 0.0
        %555 = vmatprep.subr.mxu0 0.0
        %556 = vmatpush1.msra.mxu0 0.0
        %557 = vmatprep.subr.mxu0 0.0
        %558 = vmatpush1.msra.mxu0 0.0
        %559 = vmatprep.subr.mxu0 0.0
        %560 = vmatpush1.msra.mxu0 0.0
        %561 = vmatprep.subr.mxu0 0.0
        %562 = vmatpush1.msra.mxu0 0.0
        %563 = vmatprep.subr.mxu0 0.0
        %564 = vmatpush1.msra.mxu0 0.0
        %565 = vmatprep.subr.mxu0 0.0
        %566 = vmatpush1.msra.mxu0 0.0
        %567 = vmatprep.subr.mxu0 0.0
        %568 = vmatpush1.msra.mxu0 0.0
        %569 = vmatprep.subr.mxu0 0.0
        %570 = vmatpush1.msra.mxu0 0.0
        %571 = vmatprep.subr.mxu0 0.0
        %572 = vmatpush1.msra.mxu0 0.0
        %573 = vmatprep.subr.mxu0 0.0
        %574 = vmatpush1.msra.mxu0 0.0
        %575 = vmatprep.subr.mxu0 0.0
        %576 = vmatpush1.msra.mxu0 0.0
        %577 = vmatprep.subr.mxu0 0.0
        %578 = vmatpush1.msra.mxu0 0.0
        %579 = vmatprep.subr.mxu0 0.0
        %580 = vmatpush1.msra.mxu0 0.0
        %581 = vmatprep.subr.mxu0 0.0
        %582 = vmatpush1.msra.mxu0 0.0
        %583 = vmatprep.subr.mxu0 0.0
        %584 = vmatpush1.msra.mxu0 0.0
        %585 = vmatprep.mubr.f32.mxu0 0.0
        %586 = vmatmul.mubr.f32.gmra.mrb[0].mxu0 %v516
        %v587 = vpop.f32.mrb[0].mxu0
        %v588 = vadd.f32 %v457, %v587
        %v589 = vpop.f32.mrb[0].mxu0
        %590 = vdwg.mxu0
        %v591 = vld [vmem:[%s4] sm:$0xff]
        %v592 = vld [vmem:[%s4 + $0x8] sm:$0xff]
        %v593 = vld [vmem:[%s4 + $0x10] sm:$0xff]
        %v594 = vld [vmem:[%s4 + $0x18] sm:$0xff]
        %v595 = vld [vmem:[%s4 + $0x20] sm:$0xff]
        %v596 = vld [vmem:[%s4 + $0x28] sm:$0xff]
        %v597 = vld [vmem:[%s4 + $0x30] sm:$0xff]
        %v598 = vld [vmem:[%s4 + $0x38] sm:$0xff]
        %v599 = vld [vmem:[%s5] sm:$0x1]
        %v601 = vlaneseq
        %v602 = vshrl.u32 %v601, 7
        %v603 = vsub.s32 0, %v602
        %v604 = vrot.slane %v599, %v603
        %v614 = vsel %vm501, %v408, %v401
        %v615 = vsel %vm503, %v415, %v614
        %v616 = vsel %vm505, %v422, %v615
        %v617 = vsel %vm507, %v429, %v616
        %v618 = vsel %vm509, %v436, %v617
        %v619 = vsel %vm511, %v443, %v618
        %v620 = vsel %vm513, %v450, %v619
        %v621 = vsel %vm394, %v620, 0
        %623 = vmatprep.subr.mxu0 0.0
        %624 = vmatpush1.msra.mxu0 %v591
        %625 = vmatprep.subr.mxu0 0.0
        %626 = vmatpush1.msra.mxu0 %v592
        %627 = vmatprep.subr.mxu0 0.0
        %628 = vmatpush1.msra.mxu0 %v593
        %629 = vmatprep.subr.mxu0 0.0
        %630 = vmatpush1.msra.mxu0 %v594
        %631 = vmatprep.subr.mxu0 0.0
        %632 = vmatpush1.msra.mxu0 %v595
        %633 = vmatprep.subr.mxu0 0.0
        %634 = vmatpush1.msra.mxu0 %v596
        %635 = vmatprep.subr.mxu0 0.0
        %636 = vmatpush1.msra.mxu0 %v597
        %637 = vmatprep.subr.mxu0 0.0
        %638 = vmatpush1.msra.mxu0 %v598
        %639 = vmatprep.subr.mxu0 0.0
        %640 = vmatpush1.msra.mxu0 0.0
        %641 = vmatprep.subr.mxu0 0.0
        %642 = vmatpush1.msra.mxu0 0.0
        %643 = vmatprep.subr.mxu0 0.0
        %644 = vmatpush1.msra.mxu0 0.0
        %645 = vmatprep.subr.mxu0 0.0
        %646 = vmatpush1.msra.mxu0 0.0
        %647 = vmatprep.subr.mxu0 0.0
        %648 = vmatpush1.msra.mxu0 0.0
        %649 = vmatprep.subr.mxu0 0.0
        %650 = vmatpush1.msra.mxu0 0.0
        %651 = vmatprep.subr.mxu0 0.0
        %652 = vmatpush1.msra.mxu0 0.0
        %653 = vmatprep.subr.mxu0 0.0
        %654 = vmatpush1.msra.mxu0 0.0
        %655 = vmatprep.subr.mxu0 0.0
        %656 = vmatpush1.msra.mxu0 0.0
        %657 = vmatprep.subr.mxu0 0.0
        %658 = vmatpush1.msra.mxu0 0.0
        %659 = vmatprep.subr.mxu0 0.0
        %660 = vmatpush1.msra.mxu0 0.0
        %661 = vmatprep.subr.mxu0 0.0
        %662 = vmatpush1.msra.mxu0 0.0
        %663 = vmatprep.subr.mxu0 0.0
        %664 = vmatpush1.msra.mxu0 0.0
        %665 = vmatprep.subr.mxu0 0.0
        %666 = vmatpush1.msra.mxu0 0.0
        %667 = vmatprep.subr.mxu0 0.0
        %668 = vmatpush1.msra.mxu0 0.0
        %669 = vmatprep.subr.mxu0 0.0
        %670 = vmatpush1.msra.mxu0 0.0
        %671 = vmatprep.subr.mxu0 0.0
        %672 = vmatpush1.msra.mxu0 0.0
        %673 = vmatprep.subr.mxu0 0.0
        %674 = vmatpush1.msra.mxu0 0.0
        %675 = vmatprep.subr.mxu0 0.0
        %676 = vmatpush1.msra.mxu0 0.0
        %677 = vmatprep.subr.mxu0 0.0
        %678 = vmatpush1.msra.mxu0 0.0
        %679 = vmatprep.subr.mxu0 0.0
        %680 = vmatpush1.msra.mxu0 0.0
        %681 = vmatprep.subr.mxu0 0.0
        %682 = vmatpush1.msra.mxu0 0.0
        %683 = vmatprep.subr.mxu0 0.0
        %684 = vmatpush1.msra.mxu0 0.0
        %685 = vmatprep.subr.mxu0 0.0
        %686 = vmatpush1.msra.mxu0 0.0
        %687 = vmatprep.mubr.f32.mxu0 0.0
        %688 = vmatmul.mubr.f32.gmra.mrb[0].mxu0 %v621
        %v689 = vpop.f32.mrb[0].mxu0
        %v690 = vadd.f32 %v604, %v689
        %v691 = vpop.f32.mrb[0].mxu0
        %692 = vdwg.mxu0
        %v693 = vmul.f32 %v588, %v588
        %vm694 = vcmask 261120
        %v695 = vsel %vm694, %v693, 0.0
        %696 = vadd.xlane.f32.xlu0 %v695
        %v697 = vpop.xlane.xlu0 %696
        %v698 = vmax.f32 %v697, 1e-24
        %v699 = vrsqrt.pop %v698
        %v700 = vmul.f32 %v588, %v699
        %v701 = vmul.f32 %v690, %v690
        %v702 = vsel %vm694, %v701, 0.0
        %703 = vadd.xlane.f32.xlu0 %v702
        %v704 = vpop.xlane.xlu0 %703
        %v705 = vmax.f32 %v704, 1e-24
        %v706 = vrsqrt.pop %v705
        %v707 = vmul.f32 %v690, %v706
        %708 = vst.msk [vmem:[%s310] sm:$0xff] %vm694, %v700
        %710 = vrot.lane.b32.xlu0 %v707, 32
        %v711 = vpop.permute.xlu0 %710
        %vm713 = vcmask 523520
        %714 = vst.msk [vmem:[%s310] sm:$0xff] %vm713, %v711
        %s715 = sand.u32 %s170, 1
        %s716 = scalar_lea.sflag [#allocation4], %s715
        %s717 = sand.u32 %s170, 1
        %s718 = smul.addr %s717, 8
        %s719 = scalar_lea.vmem [#allocation7], %s718
        // Predicated region
        $region53: #{tpu_custom_call.1} parent=43 // pred_check
          %p720 = pneg %p180
        $region54: #{tpu_custom_call.1} parent=43 // pred_check_branch
          %722 = sbr.rel (%p720) target = $region56
        $region55: #{tpu_custom_call.1} parent=43 // pred_region
          %s724 = ssub.s32 128, 128
          %725 = vsyncadd %s716, %s724
          %s726 = smul.addr %s26, 128
          %s727 = scalar_lea.hbm %s6, %s726
          %s729 = sshll.u32 %s719, 4
          %s730 = int_to_ptr.vmem [resolvable:$true] %s729
          %732 = dma.vmem_to_hbm [thread:$0]  %s730, 128, %s727, %s716
        $region56: #{tpu_custom_call.1} parent=43 // pred_fallthru
          _
      $region44: #{tpu_custom_call.1} parent=5 // pred_fallthru
        _
      %p733 = scmp.le.s32.totalorder 2, %s21
      // Predicated region
      $region57: #{tpu_custom_call.1} parent=5 // pred_check
        %p734 = pneg %p733
      $region58: #{tpu_custom_call.1} parent=5 // pred_check_branch
        %736 = sbr.rel (%p734) target = $region60
      $region59: #{tpu_custom_call.1} parent=5 // pred_region
        %s737 = ssub.s32 %s21, 2
        // Predicated region
        $region61: #{tpu_custom_call.1} parent=59 // pred_check
          %p738 = pneg %p186
        $region62: #{tpu_custom_call.1} parent=59 // pred_check_branch
          %740 = sbr.rel (%p738) target = $region64
        $region63: #{tpu_custom_call.1} parent=59 // pred_region
          %s741 = sand.u32 %s171, 1
          %s742 = scalar_lea.sflag [#allocation4], %s741
          %s743 = sand.u32 %s171, 1
          %s744 = smul.addr %s743, 8
          %s745 = scalar_lea.vmem [#allocation7], %s744
          %746 = dma.done %s742, 128
        $region64: #{tpu_custom_call.1} parent=59 // pred_fallthru
          _
      $region60: #{tpu_custom_call.1} parent=5 // pred_fallthru
        _
    $region6: #{tpu_custom_call.1} parent=1 // loop_footer
      %s25 = sadd.s32 1, %s21
    $region7: #{tpu_custom_call.1} parent=1 // loop_footer_branch
      %20 = sbr.rel target = $region3
    $region8: #{tpu_custom_call.1} parent=1 // loop_exit
      _
    %747 = vsyncpa [#allocation3], 1
    %s748 = scalar_lea.sflag [#allocation3], 1
    %749 = vsyncpa %s748, 1
    %750 = vsyncpa [#allocation6], 1
    %s751 = scalar_lea.sflag [#allocation6], 1
    %752 = vsyncpa %s751, 1
    %753 = vsyncpa [#allocation4], 1
    %s754 = scalar_lea.sflag [#allocation4], 1
    %755 = vsyncpa %s754, 1

</llo_original>
